<compile_context>
chip_gen: v7x
topology: tpu7x:2x2x1
jax: 0.10.0
libtpu: 0.0.40
codegen_flags: <defaults>
</compile_context>

<pallas_src>
import functools
import re

import jax
import jax.numpy as jnp
from jax.experimental import pallas as pl
from jax.experimental.pallas import tpu as pltpu


def _round_up(n, m):
    return ((n + m - 1) // m) * m


def _tpu_generation():
    """Best-effort TPU generation (5, 6, 7, ...) from the device kind string."""
    try:
        kind = jax.devices()[0].device_kind
    except Exception:
        return None
    m = re.search(r"(\d+)", kind)
    return int(m.group(1)) if m else None


def _vmem_capacity_bytes(gen):
    try:
        info = pltpu.get_tpu_info()
        v = getattr(info, "vmem_capacity_bytes", None)
        if v:
            return int(v)
    except Exception:
        pass
    if gen is not None and gen >= 7:
        return 64 * 1024 * 1024       # v7x: 64 MiB per TensorCore
    return 128 * 1024 * 1024          # v5e / v6e: 128 MiB


def drnet_phi_kernel(x_ref, w1_ref, b1_ref, w2_ref, b2_ref, w3_ref, b3_ref, o_ref,
                     *, elu_dtype):
    """One batch tile of the fused 3x(Linear + ELU) MLP."""
    cdt = w1_ref.dtype  # MXU operand dtype (bf16 or f32); accumulation is f32.

    def elu(v):
        # F.elu(alpha=1): exp(min(v,0)) - 1 on the negative branch.
        # One EUP push + one VALU sub; the clamp keeps the discarded positive
        # branch from overflowing.  elu_dtype is bf16 on v6e/v7x (bf16 EUP path),
        # f32 on v5e / f32-operand mode.
        v = v.astype(elu_dtype)
        return jnp.where(v > 0, v, jnp.exp(jnp.minimum(v, 0.0)) - 1.0)

    x = x_ref[...].astype(cdt)  # mirrors torch `x.float()` (+ optional bf16 cast)
    h = jnp.dot(x, w1_ref[...], preferred_element_type=jnp.float32) + b1_ref[...]
    h = elu(h)
    h = jnp.dot(h.astype(cdt), w2_ref[...], preferred_element_type=jnp.float32) + b2_ref[...]
    h = elu(h)
    h = jnp.dot(h.astype(cdt), w3_ref[...], preferred_element_type=jnp.float32) + b3_ref[...]
    h = elu(h)
    # Padded hidden lanes [S, S_pad) are exactly 0 throughout; they are simply
    # never stored (o_ref is only S lanes wide).
    o_ref[...] = h[:, : o_ref.shape[1]].astype(o_ref.dtype)


def drnet_phi(x, params, *, block_b=None, use_bf16=True, out_dtype=jnp.float32):
    """Fused DRNetPhi forward.

    x: [B, input_nodes] (any floating dtype; integers are cast like torch .float())
    params: w1 [in, S], b1 [1, S], w2 [S, S], b2 [1, S], w3 [S, S], b3 [1, S]
            (weights stored [in, out], i.e. transposed vs. torch Linear.weight)
    Returns: [B, S] in out_dtype (default float32, matching the torch module).
    Note: with use_bf16=True the matmul operands (and on v6e/v7x the ELUs) run in
    bf16 with f32 accumulation — accuracy is ~bf16-level (few 1e-3 relative).
    """
    if not jnp.issubdtype(x.dtype, jnp.floating):
        x = x.astype(jnp.float32)
    B, in_dim = x.shape
    S = params["w1"].shape[1]
    S_pad = _round_up(S, 128)           # lane-dense hidden width for the MXU / weights

    gen = _tpu_generation()
    vmem_cap = _vmem_capacity_bytes(gen)
    compute_dtype = jnp.bfloat16 if use_bf16 else jnp.float32
    # bf16 EUP exists on v6e/v7x; keep ELU in f32 on v5e / unknown generations.
    elu_dtype = jnp.bfloat16 if (use_bf16 and gen is not None and gen >= 6) else jnp.float32

    def pad_w(w, rows, cols):
        w = w.astype(jnp.float32)
        w = jnp.pad(w, ((0, rows - w.shape[0]), (0, cols - w.shape[1])))
        return w.astype(compute_dtype)

    def pad_b(b, cols):
        b = b.reshape(1, -1).astype(jnp.float32)
        return jnp.pad(b, ((0, 0), (0, cols - b.shape[1])))

    # NOTE: in_dim (layer-1 K) is intentionally NOT padded — layer 1 is ~6% of the
    # FLOPs and padding K would only inflate the x DMA and VMEM footprint.
    w1 = pad_w(params["w1"], in_dim, S_pad)
    w2 = pad_w(params["w2"], S_pad, S_pad)
    w3 = pad_w(params["w3"], S_pad, S_pad)
    b1 = pad_b(params["b1"], S_pad)
    b2 = pad_b(params["b2"], S_pad)
    b3 = pad_b(params["b3"], S_pad)

    x_bytes = jnp.dtype(x.dtype).itemsize
    out_bytes = jnp.dtype(out_dtype).itemsize
    cdt_bytes = jnp.dtype(compute_dtype).itemsize
    weight_bytes = (in_dim * S_pad + 2 * S_pad * S_pad) * cdt_bytes + 3 * S_pad * 4
    # VMEM per batch row in flight: double-buffered x / out tiles, ~3 f32
    # intermediates of width S_pad, ~2 bf16 operand copies.
    per_row = (2 * in_dim * x_bytes + 2 * S * out_bytes
               + 3 * S_pad * 4 + 2 * S_pad * cdt_bytes)

    if block_b is None:
        budget = vmem_cap // 2                          # use at most ~half of VMEM
        block_b = max(8, (budget - 2 * weight_bytes) // max(per_row, 1))
        block_b = min(block_b, 1024)
        # Keep >= ~8 grid steps when B allows it: shards across v7x's two
        # TensorCores and gives the pipelined x/out DMAs work to hide behind.
        block_b = min(block_b, _round_up(pl.cdiv(B, 8), 8))
    block_b = int(max(8, (block_b // 8) * 8))

    # Ragged last tile: Pallas pads out-of-bounds input reads (values ignored by
    # the masked output store), so no wrapper-side pad/slice HBM passes.
    grid = (pl.cdiv(B, block_b),)

    footprint = 2 * weight_bytes + per_row * block_b
    vmem_limit = int(min(int(0.75 * vmem_cap),
                         max(2 * footprint, 16 * 1024 * 1024)))

    flops = int(2 * B * (in_dim * S_pad + 2 * S_pad * S_pad) + 6 * B * S_pad)
    transcendentals = int(3 * B * S_pad)
    bytes_accessed = int(B * in_dim * x_bytes + B * S * out_bytes + weight_bytes)

    kernel = functools.partial(drnet_phi_kernel, elu_dtype=elu_dtype)

    def const2d(shape):
        # Constant-index block: resident across all grid steps (fetched once).
        return pl.BlockSpec(shape, lambda i: (0, 0))

    return pl.pallas_call(
        kernel,
        out_shape=jax.ShapeDtypeStruct((B, S), out_dtype),
        grid_spec=pltpu.PrefetchScalarGridSpec(
            num_scalar_prefetch=0,
            grid=grid,
            in_specs=[
                pl.BlockSpec((block_b, in_dim), lambda i: (i, 0)),  # x tile (pipelined)
                const2d((in_dim, S_pad)),
                const2d((1, S_pad)),
                const2d((S_pad, S_pad)),
                const2d((1, S_pad)),
                const2d((S_pad, S_pad)),
                const2d((1, S_pad)),
            ],
            out_specs=pl.BlockSpec((block_b, S), lambda i: (i, 0)),
        ),
        compiler_params=pltpu.CompilerParams(
            dimension_semantics=("parallel",),
            vmem_limit_bytes=vmem_limit,
        ),
        cost_estimate=pl.CostEstimate(
            flops=flops,
            transcendentals=transcendentals,
            bytes_accessed=bytes_accessed,
        ),
    )(x, w1, b1, w2, b2, w3, b3)


def init_params(key, input_nodes, shared_nodes):
    """PyTorch-style uniform(-1/sqrt(fan_in), 1/sqrt(fan_in)) init; weights [in, out]."""
    keys = jax.random.split(key, 6)

    def linear(kw, kb, fan_in, fan_out):
        bound = 1.0 / jnp.sqrt(jnp.float32(fan_in))
        w = jax.random.uniform(kw, (fan_in, fan_out), jnp.float32, -bound, bound)
        b = jax.random.uniform(kb, (1, fan_out), jnp.float32, -bound, bound)
        return w, b

    w1, b1 = linear(keys[0], keys[1], input_nodes, shared_nodes)
    w2, b2 = linear(keys[2], keys[3], shared_nodes, shared_nodes)
    w3, b3 = linear(keys[4], keys[5], shared_nodes, shared_nodes)
    return {"w1": w1, "b1": b1, "w2": w2, "b2": b2, "w3": w3, "b3": b3}


def drnet_phi_ref(x, params):
    """Pure-JAX f32 reference (uses expm1, like torch F.elu)."""
    def elu(v):
        return jnp.where(v > 0, v, jnp.expm1(jnp.minimum(v, 0.0)))

    h = elu(x.astype(jnp.float32) @ params["w1"] + params["b1"])
    h = elu(h @ params["w2"] + params["b2"])
    h = elu(h @ params["w3"] + params["b3"])
    return h


if __name__ == "__main__":
    key = jax.random.PRNGKey(0)
    k_x, k_p = jax.random.split(key)

    batch = 20          # NOT a multiple of the tile -> exercises the ragged last block
    input_nodes = 32
    shared_nodes = 200  # module default; exercises the S -> 256 weight lane padding

    x = jax.random.normal(k_x, (batch, input_nodes), jnp.float32)
    params = init_params(k_p, input_nodes, shared_nodes)
    ref = drnet_phi_ref(x, params)

    # f32-operand path: must match the reference tightly.
    out_f32 = jax.block_until_ready(drnet_phi(x, params, use_bf16=False))
    assert out_f32.shape == (batch, shared_nodes)
    assert bool(jnp.allclose(out_f32, ref, atol=2e-5, rtol=2e-5)), "f32 mismatch vs reference"

    # bf16-operand / f32-accumulate path (default): loose sanity tolerance.
    out_bf16 = jax.block_until_ready(drnet_phi(x, params, use_bf16=True))
    assert out_bf16.shape == (batch, shared_nodes)
    assert bool(jnp.allclose(out_bf16, ref, atol=5e-2, rtol=5e-2)), "bf16 mismatch vs reference"

    # Narrow-output option (halves the dominant HBM output stream).
    out_nb = jax.block_until_ready(
        drnet_phi(x, params, use_bf16=True, out_dtype=jnp.bfloat16))
    assert out_nb.shape == (batch, shared_nodes) and out_nb.dtype == jnp.bfloat16
    assert bool(jnp.allclose(out_nb.astype(jnp.float32), ref, atol=1e-1, rtol=1e-1)), \
        "bf16-output mismatch vs reference"

    print("KERNEL_OK")
</pallas_src>

<mosaic_0001>
module attributes {stable_mosaic.version = 11 : i64} {
  func.func @drnet_phi_kernel(%arg0: i32, %arg1: memref<8x32xf32, #tpu.memory_space<vmem>>, %arg2: memref<32x256xf32, #tpu.memory_space<vmem>>, %arg3: memref<1x256xf32, #tpu.memory_space<vmem>>, %arg4: memref<256x256xf32, #tpu.memory_space<vmem>>, %arg5: memref<1x256xf32, #tpu.memory_space<vmem>>, %arg6: memref<256x256xf32, #tpu.memory_space<vmem>>, %arg7: memref<1x256xf32, #tpu.memory_space<vmem>>, %arg8: memref<8x200xf32, #tpu.memory_space<vmem>>) attributes {dimension_semantics = [#tpu.dimension_semantics<parallel>], iteration_bounds = array<i64: 3>, scalar_prefetch = 0 : i64, scratch_operands = 0 : i64, tpu.core_type = #tpu.core_type<tc>, window_params = [{transform_indices = @transform_0, window_bounds = array<i64: 8, 32>}, {pipeline_mode = #tpu.pipeline_mode<synchronous>, transform_indices = @transform_1, window_bounds = array<i64: 32, 256>}, {pipeline_mode = #tpu.pipeline_mode<synchronous>, transform_indices = @transform_2, window_bounds = array<i64: 1, 256>}, {pipeline_mode = #tpu.pipeline_mode<synchronous>, transform_indices = @transform_3, window_bounds = array<i64: 256, 256>}, {pipeline_mode = #tpu.pipeline_mode<synchronous>, transform_indices = @transform_4, window_bounds = array<i64: 1, 256>}, {pipeline_mode = #tpu.pipeline_mode<synchronous>, transform_indices = @transform_5, window_bounds = array<i64: 256, 256>}, {pipeline_mode = #tpu.pipeline_mode<synchronous>, transform_indices = @transform_6, window_bounds = array<i64: 1, 256>}, {transform_indices = @transform_7, window_bounds = array<i64: 8, 200>}]} {
    %c0 = arith.constant 0 : index
    %c0_0 = arith.constant 0 : index
    %0 = vector.load %arg1[%c0, %c0_0] : memref<8x32xf32, #tpu.memory_space<vmem>>, vector<8x32xf32>
    %c0_1 = arith.constant 0 : index
    %c0_2 = arith.constant 0 : index
    %1 = vector.load %arg2[%c0_1, %c0_2] : memref<32x256xf32, #tpu.memory_space<vmem>>, vector<32x256xf32>
    %cst = arith.constant dense<0.000000e+00> : vector<8x256xf32>
    %2 = tpu.matmul %0, %1, %cst {dimension_numbers = #tpu.dot_dimension_numbers<[1], [0], [0], [1], [0, 0, 1, 1], [], []>} : vector<8x32xf32>, vector<32x256xf32>, vector<8x256xf32> -> vector<8x256xf32>
    %c0_3 = arith.constant 0 : index
    %c0_4 = arith.constant 0 : index
    %3 = vector.load %arg3[%c0_3, %c0_4] : memref<1x256xf32, #tpu.memory_space<vmem>>, vector<1x256xf32>
    %4 = vector.broadcast %3 : vector<1x256xf32> to vector<8x256xf32>
    %5 = arith.addf %2, %4 : vector<8x256xf32>
    %cst_5 = arith.constant 0.000000e+00 : f32
    %6 = vector.broadcast %cst_5 : f32 to vector<8x256xf32>
    %7 = arith.cmpf ogt, %5, %6 : vector<8x256xf32>
    %cst_6 = arith.constant 0.000000e+00 : f32
    %8 = vector.broadcast %cst_6 : f32 to vector<8x256xf32>
    %9 = arith.minimumf %5, %8 : vector<8x256xf32>
    %10 = math.exp %9 : vector<8x256xf32>
    %cst_7 = arith.constant 1.000000e+00 : f32
    %11 = vector.broadcast %cst_7 : f32 to vector<8x256xf32>
    %12 = arith.subf %10, %11 : vector<8x256xf32>
    %13 = arith.select %7, %5, %12 : vector<8x256xi1>, vector<8x256xf32>
    %c0_8 = arith.constant 0 : index
    %c0_9 = arith.constant 0 : index
    %14 = vector.load %arg4[%c0_8, %c0_9] : memref<256x256xf32, #tpu.memory_space<vmem>>, vector<256x256xf32>
    %cst_10 = arith.constant dense<0.000000e+00> : vector<8x256xf32>
    %15 = tpu.matmul %13, %14, %cst_10 {dimension_numbers = #tpu.dot_dimension_numbers<[1], [0], [0], [1], [0, 0, 1, 1], [], []>} : vector<8x256xf32>, vector<256x256xf32>, vector<8x256xf32> -> vector<8x256xf32>
    %c0_11 = arith.constant 0 : index
    %c0_12 = arith.constant 0 : index
    %16 = vector.load %arg5[%c0_11, %c0_12] : memref<1x256xf32, #tpu.memory_space<vmem>>, vector<1x256xf32>
    %17 = vector.broadcast %16 : vector<1x256xf32> to vector<8x256xf32>
    %18 = arith.addf %15, %17 : vector<8x256xf32>
    %cst_13 = arith.constant 0.000000e+00 : f32
    %19 = vector.broadcast %cst_13 : f32 to vector<8x256xf32>
    %20 = arith.cmpf ogt, %18, %19 : vector<8x256xf32>
    %cst_14 = arith.constant 0.000000e+00 : f32
    %21 = vector.broadcast %cst_14 : f32 to vector<8x256xf32>
    %22 = arith.minimumf %18, %21 : vector<8x256xf32>
    %23 = math.exp %22 : vector<8x256xf32>
    %cst_15 = arith.constant 1.000000e+00 : f32
    %24 = vector.broadcast %cst_15 : f32 to vector<8x256xf32>
    %25 = arith.subf %23, %24 : vector<8x256xf32>
    %26 = arith.select %20, %18, %25 : vector<8x256xi1>, vector<8x256xf32>
    %c0_16 = arith.constant 0 : index
    %c0_17 = arith.constant 0 : index
    %27 = vector.load %arg6[%c0_16, %c0_17] : memref<256x256xf32, #tpu.memory_space<vmem>>, vector<256x256xf32>
    %cst_18 = arith.constant dense<0.000000e+00> : vector<8x256xf32>
    %28 = tpu.matmul %26, %27, %cst_18 {dimension_numbers = #tpu.dot_dimension_numbers<[1], [0], [0], [1], [0, 0, 1, 1], [], []>} : vector<8x256xf32>, vector<256x256xf32>, vector<8x256xf32> -> vector<8x256xf32>
    %c0_19 = arith.constant 0 : index
    %c0_20 = arith.constant 0 : index
    %29 = vector.load %arg7[%c0_19, %c0_20] : memref<1x256xf32, #tpu.memory_space<vmem>>, vector<1x256xf32>
    %30 = vector.broadcast %29 : vector<1x256xf32> to vector<8x256xf32>
    %31 = arith.addf %28, %30 : vector<8x256xf32>
    %cst_21 = arith.constant 0.000000e+00 : f32
    %32 = vector.broadcast %cst_21 : f32 to vector<8x256xf32>
    %33 = arith.cmpf ogt, %31, %32 : vector<8x256xf32>
    %cst_22 = arith.constant 0.000000e+00 : f32
    %34 = vector.broadcast %cst_22 : f32 to vector<8x256xf32>
    %35 = arith.minimumf %31, %34 : vector<8x256xf32>
    %36 = math.exp %35 : vector<8x256xf32>
    %cst_23 = arith.constant 1.000000e+00 : f32
    %37 = vector.broadcast %cst_23 : f32 to vector<8x256xf32>
    %38 = arith.subf %36, %37 : vector<8x256xf32>
    %39 = arith.select %33, %31, %38 : vector<8x256xi1>, vector<8x256xf32>
    %40 = vector.extract_strided_slice %39 {offsets = [0, 0], sizes = [8, 200], strides = [1, 1]} : vector<8x256xf32> to vector<8x200xf32>
    %c0_24 = arith.constant 0 : index
    %c0_25 = arith.constant 0 : index
    %41 = vector.load %arg8[%c0_24, %c0_25] : memref<8x200xf32, #tpu.memory_space<vmem>>, vector<8x200xf32>
    tpu.vector_store %arg8[%c0_24, %c0_25], %40 {strides = array<i32>} : memref<8x200xf32, #tpu.memory_space<vmem>>, vector<8x200xf32>,
    return
  }
  func.func @transform_0(%arg0: i32) -> (i32, i32) {
    %c0_i32 = arith.constant 0 : i32
    %c0_i32_0 = arith.constant 0 : i32
    return %arg0, %c0_i32 : i32, i32
  }
  func.func @transform_1(%arg0: i32) -> (i32, i32) {
    %c0_i32 = arith.constant 0 : i32
    %c0_i32_0 = arith.constant 0 : i32
    %c0_i32_1 = arith.constant 0 : i32
    return %c0_i32, %c0_i32_0 : i32, i32
  }
  func.func @transform_2(%arg0: i32) -> (i32, i32) {
    %c0_i32 = arith.constant 0 : i32
    %c0_i32_0 = arith.constant 0 : i32
    %c0_i32_1 = arith.constant 0 : i32
    return %c0_i32, %c0_i32_0 : i32, i32
  }
  func.func @transform_3(%arg0: i32) -> (i32, i32) {
    %c0_i32 = arith.constant 0 : i32
    %c0_i32_0 = arith.constant 0 : i32
    %c0_i32_1 = arith.constant 0 : i32
    return %c0_i32, %c0_i32_0 : i32, i32
  }
  func.func @transform_4(%arg0: i32) -> (i32, i32) {
    %c0_i32 = arith.constant 0 : i32
    %c0_i32_0 = arith.constant 0 : i32
    %c0_i32_1 = arith.constant 0 : i32
    return %c0_i32, %c0_i32_0 : i32, i32
  }
  func.func @transform_5(%arg0: i32) -> (i32, i32) {
    %c0_i32 = arith.constant 0 : i32
    %c0_i32_0 = arith.constant 0 : i32
    %c0_i32_1 = arith.constant 0 : i32
    return %c0_i32, %c0_i32_0 : i32, i32
  }
  func.func @transform_6(%arg0: i32) -> (i32, i32) {
    %c0_i32 = arith.constant 0 : i32
    %c0_i32_0 = arith.constant 0 : i32
    %c0_i32_1 = arith.constant 0 : i32
    return %c0_i32, %c0_i32_0 : i32, i32
  }
  func.func @transform_7(%arg0: i32) -> (i32, i32) {
    %c0_i32 = arith.constant 0 : i32
    %c0_i32_0 = arith.constant 0 : i32
    return %arg0, %c0_i32 : i32, i32
  }
}

</mosaic_0001>

<llo_original>
// kernel: tpu_custom_call.1
$region0: #{tpu_custom_call.1}
  #allocation0 [shape = 'u32[]', space=smem, size = 0x4, offset = 0x4, fixed_abs, tag = 'smem constant byte address 0x4 - core index']
  #allocation1 [shape = 'u32[144,128]{1,0:T(1,128)}', space=vmem, size = 0x12000, scoped, tag = 'internal scratch']
  %s0 = inlined_call_operand.hbm [shape: f32[20,32], index: 0, kind: input, shape index: {}]
  %s1 = inlined_call_operand.hbm [shape: f32[32,256], index: 1, kind: input, shape index: {}]
  %s2 = inlined_call_operand.vmem [shape: f32[1,256], index: 2, kind: input, shape index: {}]
  %s3 = inlined_call_operand.hbm [shape: f32[256,256], index: 3, kind: input, shape index: {}]
  %s4 = inlined_call_operand.vmem [shape: f32[1,256], index: 4, kind: input, shape index: {}]
  %s5 = inlined_call_operand.hbm [shape: f32[256,256], index: 5, kind: input, shape index: {}]
  %s6 = inlined_call_operand.vmem [shape: f32[1,256], index: 6, kind: input, shape index: {}]
  %s7 = inlined_call_operand.hbm [shape: f32[20,200], index: 7, kind: output, shape index: {}]
  %s8 = sld [smem:[#allocation0]]
  $region77: #{tpu_custom_call.1} parent=0
    _
  %s10 = ssub.s32 1, %s8
  %s11 = scalar_select 0, %s10, %s8
  $region1: #{tpu_custom_call.1} parent=0
    #allocation2 [shape = 'u8[8192]{0}', space=vmem, size = 0x2000, scoped, tag = 'input window, operand 0']
    #allocation3 [shape = 's32[2]{0}', space=sflag, size = 0x8, scoped, tag = 'scoped memory for tpu_custom_call.1']
    #allocation4 [shape = 's32[2]{0}', space=sflag, size = 0x8, scoped, tag = 'scoped memory for tpu_custom_call.1']
    #allocation5 [shape = 'u8[32768]{0}', space=vmem, size = 0x8000, scoped, tag = 'input window, operand 1, single buffered']
    #allocation6 [shape = 's32[1]{0}', space=sflag, size = 0x4, scoped, tag = 'scoped memory for tpu_custom_call.1']
    #allocation7 [shape = 'u8[262144]{0}', space=vmem, size = 0x40000, scoped, tag = 'input window, operand 3, single buffered']
    #allocation8 [shape = 'u8[262144]{0}', space=vmem, size = 0x40000, scoped, tag = 'input window, operand 5, single buffered']
    #allocation9 [shape = 's32[1]{0}', space=sflag, size = 0x4, scoped, tag = 'scoped memory for tpu_custom_call.1']
    #allocation10 [shape = 'u8[16384]{0}', space=vmem, size = 0x4000, scoped, tag = 'output window, operand 0']
    %12 = vsyncpa [#allocation3], 0
    %s13 = scalar_lea.sflag [#allocation3], 1
    %14 = vsyncpa %s13, 0
    %15 = vsyncpa [#allocation6], 0
    %16 = vsyncpa [#allocation9], 0
    %17 = vsyncpa [#allocation4], 0
    %s18 = scalar_lea.sflag [#allocation4], 1
    %19 = vsyncpa %s18, 0
    loop: start=0, step=1, limit=5
    $region2: #{tpu_custom_call.1} parent=1 // loop_pre_header
      _
    $region3: #{tpu_custom_call.1} parent=1 // loop_header
      %s21 = sphi 0, %s25
      %p22 = scmp.ge.s32.totalorder %s21, 5
      %s31 = sphi 0, %s33
      %s34 = sphi 0, %s31
      %s35 = sphi 0, %s34
      %s51 = sphi 0, %s35
      %s55 = sphi 0, %s55
      %s57 = sphi 0, %s55
      %s58 = sphi 0, %s57
      %s72 = sphi 0, %s58
      %s76 = sphi 0, %s76
      %s78 = sphi 0, %s76
      %s79 = sphi 0, %s78
      %s93 = sphi 0, %s79
      %s97 = sphi 0, %s97
      %s99 = sphi 0, %s97
      %s100 = sphi 0, %s99
      %s114 = sphi 0, %s100
      %s118 = sphi 0, %s118
      %s120 = sphi 0, %s118
      %s121 = sphi 0, %s120
      %s135 = sphi 0, %s121
      %s139 = sphi 0, %s139
      %s141 = sphi 0, %s139
      %s142 = sphi 0, %s141
      %s156 = sphi 0, %s142
      %s160 = sphi 0, %s160
      %s162 = sphi 0, %s160
      %s163 = sphi 0, %s162
      %s177 = sphi 0, %s163
      %s183 = sphi 0, %s185
      %s186 = sphi 0, %s183
      %s187 = sphi 0, %s186
      %s203 = sphi 0, %s187
    $region4: #{tpu_custom_call.1} parent=1 // loop_header_branch
      %24 = sbr.rel (%p22) target = $region8
    $region5: #{tpu_custom_call.1} parent=1 // loop_body
      %s26 = ssub.s32 %s21, 1
      %s27 = ssub.s32 %s21, 2
      %s28 = sadd.s32 %s21, 1
      %s29 = ssub.s32 %s21, %s28
      %p30 = scmp.eq.s32.totalorder %s29, 0
      %s32 = sadd.s32 %s31, 1
      %s33 = scalar_select %p30, %s31, %s32
      %p36 = pneg %p30
      %p37 = scmp.eq.s32.totalorder %s21, 2
      %p38 = por %p36, %p37
      %p39 = scmp.ne.s32.totalorder %s31, %s34
      %p40 = scmp.eq.s32.totalorder %s21, 0
      %p41 = por %p39, %p40
      %p42 = scmp.ne.s32.totalorder %s31, %s34
      %p43 = scmp.eq.s32.totalorder %s26, 2
      %p44 = por %p42, %p43
      %p45 = scmp.ne.s32.totalorder %s34, %s35
      %p46 = scmp.eq.s32.totalorder %s26, 0
      %p47 = por %p45, %p46
      %p48 = scmp.ne.s32.totalorder %s34, %s35
      %p49 = scmp.eq.s32.totalorder %s27, 2
      %p50 = por %p48, %p49
      %p52 = scmp.ne.s32.totalorder %s35, %s51
      %p53 = scmp.eq.s32.totalorder %s27, 0
      %p54 = por %p52, %p53
      %s56 = sadd.s32 %s55, 1
      %p59 = scmp.eq.s32.totalorder %s21, 2
      %p60 = scmp.ne.s32.totalorder %s55, %s57
      %p61 = scmp.eq.s32.totalorder %s21, 0
      %p62 = por %p60, %p61
      %p63 = scmp.ne.s32.totalorder %s55, %s57
      %p64 = scmp.eq.s32.totalorder %s26, 2
      %p65 = por %p63, %p64
      %p66 = scmp.ne.s32.totalorder %s57, %s58
      %p67 = scmp.eq.s32.totalorder %s26, 0
      %p68 = por %p66, %p67
      %p69 = scmp.ne.s32.totalorder %s57, %s58
      %p70 = scmp.eq.s32.totalorder %s27, 2
      %p71 = por %p69, %p70
      %p73 = scmp.ne.s32.totalorder %s58, %s72
      %p74 = scmp.eq.s32.totalorder %s27, 0
      %p75 = por %p73, %p74
      %s77 = sadd.s32 %s76, 1
      %p80 = scmp.eq.s32.totalorder %s21, 2
      %p81 = scmp.ne.s32.totalorder %s76, %s78
      %p82 = scmp.eq.s32.totalorder %s21, 0
      %p83 = por %p81, %p82
      %p84 = scmp.ne.s32.totalorder %s76, %s78
      %p85 = scmp.eq.s32.totalorder %s26, 2
      %p86 = por %p84, %p85
      %p87 = scmp.ne.s32.totalorder %s78, %s79
      %p88 = scmp.eq.s32.totalorder %s26, 0
      %p89 = por %p87, %p88
      %p90 = scmp.ne.s32.totalorder %s78, %s79
      %p91 = scmp.eq.s32.totalorder %s27, 2
      %p92 = por %p90, %p91
      %p94 = scmp.ne.s32.totalorder %s79, %s93
      %p95 = scmp.eq.s32.totalorder %s27, 0
      %p96 = por %p94, %p95
      %s98 = sadd.s32 %s97, 1
      %p101 = scmp.eq.s32.totalorder %s21, 2
      %p102 = scmp.ne.s32.totalorder %s97, %s99
      %p103 = scmp.eq.s32.totalorder %s21, 0
      %p104 = por %p102, %p103
      %p105 = scmp.ne.s32.totalorder %s97, %s99
      %p106 = scmp.eq.s32.totalorder %s26, 2
      %p107 = por %p105, %p106
      %p108 = scmp.ne.s32.totalorder %s99, %s100
      %p109 = scmp.eq.s32.totalorder %s26, 0
      %p110 = por %p108, %p109
      %p111 = scmp.ne.s32.totalorder %s99, %s100
      %p112 = scmp.eq.s32.totalorder %s27, 2
      %p113 = por %p111, %p112
      %p115 = scmp.ne.s32.totalorder %s100, %s114
      %p116 = scmp.eq.s32.totalorder %s27, 0
      %p117 = por %p115, %p116
      %s119 = sadd.s32 %s118, 1
      %p122 = scmp.eq.s32.totalorder %s21, 2
      %p123 = scmp.ne.s32.totalorder %s118, %s120
      %p124 = scmp.eq.s32.totalorder %s21, 0
      %p125 = por %p123, %p124
      %p126 = scmp.ne.s32.totalorder %s118, %s120
      %p127 = scmp.eq.s32.totalorder %s26, 2
      %p128 = por %p126, %p127
      %p129 = scmp.ne.s32.totalorder %s120, %s121
      %p130 = scmp.eq.s32.totalorder %s26, 0
      %p131 = por %p129, %p130
      %p132 = scmp.ne.s32.totalorder %s120, %s121
      %p133 = scmp.eq.s32.totalorder %s27, 2
      %p134 = por %p132, %p133
      %p136 = scmp.ne.s32.totalorder %s121, %s135
      %p137 = scmp.eq.s32.totalorder %s27, 0
      %p138 = por %p136, %p137
      %s140 = sadd.s32 %s139, 1
      %p143 = scmp.eq.s32.totalorder %s21, 2
      %p144 = scmp.ne.s32.totalorder %s139, %s141
      %p145 = scmp.eq.s32.totalorder %s21, 0
      %p146 = por %p144, %p145
      %p147 = scmp.ne.s32.totalorder %s139, %s141
      %p148 = scmp.eq.s32.totalorder %s26, 2
      %p149 = por %p147, %p148
      %p150 = scmp.ne.s32.totalorder %s141, %s142
      %p151 = scmp.eq.s32.totalorder %s26, 0
      %p152 = por %p150, %p151
      %p153 = scmp.ne.s32.totalorder %s141, %s142
      %p154 = scmp.eq.s32.totalorder %s27, 2
      %p155 = por %p153, %p154
      %p157 = scmp.ne.s32.totalorder %s142, %s156
      %p158 = scmp.eq.s32.totalorder %s27, 0
      %p159 = por %p157, %p158
      %s161 = sadd.s32 %s160, 1
      %p164 = scmp.eq.s32.totalorder %s21, 2
      %p165 = scmp.ne.s32.totalorder %s160, %s162
      %p166 = scmp.eq.s32.totalorder %s21, 0
      %p167 = por %p165, %p166
      %p168 = scmp.ne.s32.totalorder %s160, %s162
      %p169 = scmp.eq.s32.totalorder %s26, 2
      %p170 = por %p168, %p169
      %p171 = scmp.ne.s32.totalorder %s162, %s163
      %p172 = scmp.eq.s32.totalorder %s26, 0
      %p173 = por %p171, %p172
      %p174 = scmp.ne.s32.totalorder %s162, %s163
      %p175 = scmp.eq.s32.totalorder %s27, 2
      %p176 = por %p174, %p175
      %p178 = scmp.ne.s32.totalorder %s163, %s177
      %p179 = scmp.eq.s32.totalorder %s27, 0
      %p180 = por %p178, %p179
      %s181 = ssub.s32 %s21, %s28
      %p182 = scmp.eq.s32.totalorder %s181, 0
      %s184 = sadd.s32 %s183, 1
      %s185 = scalar_select %p182, %s183, %s184
      %p188 = pneg %p182
      %p189 = scmp.eq.s32.totalorder %s21, 2
      %p190 = por %p188, %p189
      %p191 = scmp.ne.s32.totalorder %s183, %s186
      %p192 = scmp.eq.s32.totalorder %s21, 0
      %p193 = por %p191, %p192
      %p194 = scmp.ne.s32.totalorder %s183, %s186
      %p195 = scmp.eq.s32.totalorder %s26, 2
      %p196 = por %p194, %p195
      %p197 = scmp.ne.s32.totalorder %s186, %s187
      %p198 = scmp.eq.s32.totalorder %s26, 0
      %p199 = por %p197, %p198
      %p200 = scmp.ne.s32.totalorder %s186, %s187
      %p201 = scmp.eq.s32.totalorder %s27, 2
      %p202 = por %p200, %p201
      %p204 = scmp.ne.s32.totalorder %s187, %s203
      %p205 = scmp.eq.s32.totalorder %s27, 0
      %p206 = por %p204, %p205
      %p207 = scmp.le.s32.totalorder 1, %s21
      %p208 = scmp.lt.s32.totalorder %s21, 4
      %p209 = pnand %p207, %p208
      %p210 = pneg %p209
      // Predicated region
      $region9: #{tpu_custom_call.1} parent=5 // pred_check
        _
      $region10: #{tpu_custom_call.1} parent=5 // pred_check_branch
        %212 = sbr.rel (%p209) target = $region12
      $region11: #{tpu_custom_call.1} parent=5 // pred_region
        %s213 = ssub.s32 %s21, 1
        // Predicated region
        $region13: #{tpu_custom_call.1} parent=11 // pred_check
          %p214 = pneg %p68
        $region14: #{tpu_custom_call.1} parent=11 // pred_check_branch
          %216 = sbr.rel (%p214) target = $region16
        $region15: #{tpu_custom_call.1} parent=11 // pred_region
          %s218 = ssub.s32 1024, 1024
          %219 = vsyncadd [#allocation6], %s218
          %s220 = sshll.u32 [#allocation5], 4
          %s221 = int_to_ptr.vmem [resolvable:$true] %s220
          %226 = dma.hbm_to_vmem [thread:$0]  %s1, 1024, %s221, [#allocation6], 256, 256, 16
        $region16: #{tpu_custom_call.1} parent=11 // pred_fallthru
          _
        // Predicated region
        $region17: #{tpu_custom_call.1} parent=11 // pred_check
          %p227 = pneg %p89
        $region18: #{tpu_custom_call.1} parent=11 // pred_check_branch
          %229 = sbr.rel (%p227) target = $region20
        $region19: #{tpu_custom_call.1} parent=11 // pred_region
          _
        $region20: #{tpu_custom_call.1} parent=11 // pred_fallthru
          _
        // Predicated region
        $region21: #{tpu_custom_call.1} parent=11 // pred_check
          %p230 = pneg %p110
        $region22: #{tpu_custom_call.1} parent=11 // pred_check_branch
          %232 = sbr.rel (%p230) target = $region24
        $region23: #{tpu_custom_call.1} parent=11 // pred_region
          %s234 = ssub.s32 8192, 8192
          %235 = vsyncadd [#allocation6], %s234
          %s236 = sshll.u32 [#allocation7], 4
          %s237 = int_to_ptr.vmem [resolvable:$true] %s236
          %242 = dma.hbm_to_vmem [thread:$0]  %s3, 8192, %s237, [#allocation6], 256, 256, 16
        $region24: #{tpu_custom_call.1} parent=11 // pred_fallthru
          _
        // Predicated region
        $region25: #{tpu_custom_call.1} parent=11 // pred_check
          %p243 = pneg %p131
        $region26: #{tpu_custom_call.1} parent=11 // pred_check_branch
          %245 = sbr.rel (%p243) target = $region28
        $region27: #{tpu_custom_call.1} parent=11 // pred_region
          _
        $region28: #{tpu_custom_call.1} parent=11 // pred_fallthru
          _
        // Predicated region
        $region29: #{tpu_custom_call.1} parent=11 // pred_check
          %p246 = pneg %p152
        $region30: #{tpu_custom_call.1} parent=11 // pred_check_branch
          %248 = sbr.rel (%p246) target = $region32
        $region31: #{tpu_custom_call.1} parent=11 // pred_region
          %s250 = ssub.s32 8192, 8192
          %251 = vsyncadd [#allocation9], %s250
          %s252 = sshll.u32 [#allocation8], 4
          %s253 = int_to_ptr.vmem [resolvable:$true] %s252
          %258 = dma.hbm_to_vmem [thread:$0]  %s5, 8192, %s253, [#allocation9], 256, 256, 16
        $region32: #{tpu_custom_call.1} parent=11 // pred_fallthru
          _
        // Predicated region
        $region33: #{tpu_custom_call.1} parent=11 // pred_check
          %p259 = pneg %p173
        $region34: #{tpu_custom_call.1} parent=11 // pred_check_branch
          %261 = sbr.rel (%p259) target = $region36
        $region35: #{tpu_custom_call.1} parent=11 // pred_region
          _
        $region36: #{tpu_custom_call.1} parent=11 // pred_fallthru
          _
      $region12: #{tpu_custom_call.1} parent=5 // pred_fallthru
        _
      %p262 = scmp.lt.s32.totalorder %s21, 3
      // Predicated region
      $region37: #{tpu_custom_call.1} parent=5 // pred_check
        %p263 = pneg %p262
      $region38: #{tpu_custom_call.1} parent=5 // pred_check_branch
        %265 = sbr.rel (%p263) target = $region40
      $region39: #{tpu_custom_call.1} parent=5 // pred_region
        // Predicated region
        $region41: #{tpu_custom_call.1} parent=39 // pred_check
          %p266 = pneg %p41
        $region42: #{tpu_custom_call.1} parent=39 // pred_check_branch
          %268 = sbr.rel (%p266) target = $region44
        $region43: #{tpu_custom_call.1} parent=39 // pred_region
          %s269 = sand.u32 %s31, 1
          %s270 = scalar_lea.sflag [#allocation3], %s269
          %s271 = sand.u32 %s31, 1
          %s272 = smul.addr %s271, 8
          %s273 = scalar_lea.vmem [#allocation2], %s272
          %s275 = ssub.s32 128, 128
          %276 = vsyncadd %s270, %s275
          %s277 = smul.addr %s21, 128
          %s278 = scalar_lea.hbm %s0, %s277
          %s280 = sshll.u32 %s273, 4
          %s281 = int_to_ptr.vmem [resolvable:$true] %s280
          %283 = dma.hbm_to_vmem [thread:$0]  %s278, 128, %s281, %s270
        $region44: #{tpu_custom_call.1} parent=39 // pred_fallthru
          _
      $region40: #{tpu_custom_call.1} parent=5 // pred_fallthru
        _
      %p284 = scmp.le.s32.totalorder 1, %s21
      %p285 = scmp.lt.s32.totalorder %s21, 4
      %p286 = pnand %p284, %p285
      %p287 = pneg %p286
      // Predicated region
      $region45: #{tpu_custom_call.1} parent=5 // pred_check
        _
      $region46: #{tpu_custom_call.1} parent=5 // pred_check_branch
        %289 = sbr.rel (%p286) target = $region48
      $region47: #{tpu_custom_call.1} parent=5 // pred_region
        %s290 = ssub.s32 %s21, 1
        %s291 = sand.u32 %s34, 1
        %s292 = scalar_lea.sflag [#allocation3], %s291
        %s293 = sand.u32 %s34, 1
        %s294 = smul.addr %s293, 8
        %s295 = scalar_lea.vmem [#allocation2], %s294
        // Predicated region
        $region49: #{tpu_custom_call.1} parent=47 // pred_check
          %p296 = pneg %p47
        $region50: #{tpu_custom_call.1} parent=47 // pred_check_branch
          %298 = sbr.rel (%p296) target = $region52
        $region51: #{tpu_custom_call.1} parent=47 // pred_region
          %299 = dma.done %s292, 128
        $region52: #{tpu_custom_call.1} parent=47 // pred_fallthru
          _
        // Predicated region
        $region53: #{tpu_custom_call.1} parent=47 // pred_check
          %p300 = pneg %p68
        $region54: #{tpu_custom_call.1} parent=47 // pred_check_branch
          %302 = sbr.rel (%p300) target = $region56
        $region55: #{tpu_custom_call.1} parent=47 // pred_region
          %303 = dma.done [#allocation6], 1024
        $region56: #{tpu_custom_call.1} parent=47 // pred_fallthru
          _
        // Predicated region
        $region57: #{tpu_custom_call.1} parent=47 // pred_check
          %p304 = pneg %p110
        $region58: #{tpu_custom_call.1} parent=47 // pred_check_branch
          %306 = sbr.rel (%p304) target = $region60
        $region59: #{tpu_custom_call.1} parent=47 // pred_region
          %307 = dma.done [#allocation6], 8192
        $region60: #{tpu_custom_call.1} parent=47 // pred_fallthru
          _
        // Predicated region
        $region61: #{tpu_custom_call.1} parent=47 // pred_check
          %p308 = pneg %p152
        $region62: #{tpu_custom_call.1} parent=47 // pred_check_branch
          %310 = sbr.rel (%p308) target = $region64
        $region63: #{tpu_custom_call.1} parent=47 // pred_region
          %311 = dma.done [#allocation9], 8192
        $region64: #{tpu_custom_call.1} parent=47 // pred_fallthru
          _
        %s312 = sand.u32 %s34, 1
        %s313 = scalar_lea.sflag [#allocation3], %s312
        %s314 = sand.u32 %s34, 1
        %s315 = smul.addr %s314, 8
        %s316 = scalar_lea.vmem [#allocation2], %s315
        %p317 = pneg %p47
        %p318 = pneg %p44
        %p319 = pneg %p68
        %p320 = pneg %p65
        %p321 = pneg %p89
        %p322 = pneg %p86
        %p323 = pneg %p110
        %p324 = pneg %p107
        %p325 = pneg %p131
        %p326 = pneg %p128
        %p327 = pneg %p152
        %p328 = pneg %p149
        %p329 = pneg %p173
        %p330 = pneg %p170
        %p331 = pneg %p199
        %p332 = pneg %p196
        %s333 = sand.u32 %s186, 1
        %s334 = scalar_lea.sflag [#allocation4], %s333
        %s335 = sand.u32 %s186, 1
        %s336 = smul.addr %s335, 16
        %s337 = scalar_lea.vmem [#allocation10], %s336
        %v338 = vld [vmem:[%s295] sm:$0xff]
        %v339 = vld [vmem:[#allocation5] sm:$0xff]
        %v340 = vld [vmem:[#allocation5 + $0x8] sm:$0xff]
        %v341 = vld [vmem:[#allocation5 + $0x10] sm:$0xff]
        %v342 = vld [vmem:[#allocation5 + $0x18] sm:$0xff]
        %v343 = vld [vmem:[#allocation5 + $0x20] sm:$0xff]
        %v344 = vld [vmem:[#allocation5 + $0x28] sm:$0xff]
        %v345 = vld [vmem:[#allocation5 + $0x30] sm:$0xff]
        %v346 = vld [vmem:[#allocation5 + $0x38] sm:$0xff]
        %v347 = vld [vmem:[%s2] sm:$0x3]
        %v349 = vlaneseq
        %v350 = vshrl.u32 %v349, 7
        %v351 = vsub.s32 0, %v350
        %v352 = vrot.slane %v347, %v351
        %v353 = vlaneseq
        %v354 = vshrl.u32 %v353, 7
        %v355 = vsub.s32 1, %v354
        %v356 = vrot.slane %v347, %v355
        %vm359 = vcmask 261120
        %v361 = vsel %vm359, %v338, 0
        %363 = vmatprep.subr.mxu0 %v340
        %364 = vmatpush1.msra.mxu0 %v339
        %365 = vmatprep.subr.mxu0 %v342
        %366 = vmatpush1.msra.mxu0 %v341
        %367 = vmatprep.subr.mxu0 %v344
        %368 = vmatpush1.msra.mxu0 %v343
        %369 = vmatprep.subr.mxu0 %v346
        %370 = vmatpush1.msra.mxu0 %v345
        %371 = vmatprep.subr.mxu0 0.0
        %372 = vmatpush1.msra.mxu0 0.0
        %373 = vmatprep.subr.mxu0 0.0
        %374 = vmatpush1.msra.mxu0 0.0
        %375 = vmatprep.subr.mxu0 0.0
        %376 = vmatpush1.msra.mxu0 0.0
        %377 = vmatprep.subr.mxu0 0.0
        %378 = vmatpush1.msra.mxu0 0.0
        %379 = vmatprep.subr.mxu0 0.0
        %380 = vmatpush1.msra.mxu0 0.0
        %381 = vmatprep.subr.mxu0 0.0
        %382 = vmatpush1.msra.mxu0 0.0
        %383 = vmatprep.subr.mxu0 0.0
        %384 = vmatpush1.msra.mxu0 0.0
        %385 = vmatprep.subr.mxu0 0.0
        %386 = vmatpush1.msra.mxu0 0.0
        %387 = vmatprep.subr.mxu0 0.0
        %388 = vmatpush1.msra.mxu0 0.0
        %389 = vmatprep.subr.mxu0 0.0
        %390 = vmatpush1.msra.mxu0 0.0
        %391 = vmatprep.subr.mxu0 0.0
        %392 = vmatpush1.msra.mxu0 0.0
        %393 = vmatprep.subr.mxu0 0.0
        %394 = vmatpush1.msra.mxu0 0.0
        %395 = vmatprep.subr.mxu0 0.0
        %396 = vmatpush1.msra.mxu0 0.0
        %397 = vmatprep.subr.mxu0 0.0
        %398 = vmatpush1.msra.mxu0 0.0
        %399 = vmatprep.subr.mxu0 0.0
        %400 = vmatpush1.msra.mxu0 0.0
        %401 = vmatprep.subr.mxu0 0.0
        %402 = vmatpush1.msra.mxu0 0.0
        %403 = vmatprep.subr.mxu0 0.0
        %404 = vmatpush1.msra.mxu0 0.0
        %405 = vmatprep.subr.mxu0 0.0
        %406 = vmatpush1.msra.mxu0 0.0
        %407 = vmatprep.subr.mxu0 0.0
        %408 = vmatpush1.msra.mxu0 0.0
        %409 = vmatprep.subr.mxu0 0.0
        %410 = vmatpush1.msra.mxu0 0.0
        %411 = vmatprep.subr.mxu0 0.0
        %412 = vmatpush1.msra.mxu0 0.0
        %413 = vmatprep.subr.mxu0 0.0
        %414 = vmatpush1.msra.mxu0 0.0
        %415 = vmatprep.subr.mxu0 0.0
        %416 = vmatpush1.msra.mxu0 0.0
        %417 = vmatprep.subr.mxu0 0.0
        %418 = vmatpush1.msra.mxu0 0.0
        %419 = vmatprep.subr.mxu0 0.0
        %420 = vmatpush1.msra.mxu0 0.0
        %421 = vmatprep.subr.mxu0 0.0
        %422 = vmatpush1.msra.mxu0 0.0
        %423 = vmatprep.subr.mxu0 0.0
        %424 = vmatpush1.msra.mxu0 0.0
        %425 = vmatprep.subr.mxu0 0.0
        %426 = vmatpush1.msra.mxu0 0.0
        %427 = vmatprep.mubr.f32.mxu0 0.0
        %428 = vmatmul.mubr.f32.gmra.mrb[0].mxu0 %v361
        %v429 = vpop.f32.mrb[0].mxu0
        %v430 = vadd.f32 %v352, %v429
        %v431 = vpop.f32.mrb[0].mxu0
        %v432 = vadd.f32 %v356, %v431
        %433 = vdwg.mxu0
        %vm434 = vcmp.gt.f32.partialorder %v430, 0.0
        %vm435 = vcmp.gt.f32.partialorder %v432, 0.0
        %v436 = vmin.f32 %v430, 0.0
        %v437 = vmin.f32 %v432, 0.0
        %v438 = vmul.f32 %v436, 1.442695
        %v439 = vpow.pop %v438
        %v440 = vmul.f32 %v437, 1.442695
        %v441 = vpow.pop %v440
        %v442 = vsub.f32 %v439, 1.0
        %v443 = vsub.f32 %v441, 1.0
        %v444 = vsel %vm434, %v430, %v442
        %v445 = vsel %vm435, %v432, %v443
        %v446 = vld [vmem:[#allocation7] sm:$0xff]
        %v447 = vld [vmem:[#allocation7 + $0x8] sm:$0xff]
        %v448 = vld [vmem:[#allocation7 + $0x10] sm:$0xff]
        %v449 = vld [vmem:[#allocation7 + $0x18] sm:$0xff]
        %v450 = vld [vmem:[#allocation7 + $0x20] sm:$0xff]
        %v451 = vld [vmem:[#allocation7 + $0x28] sm:$0xff]
        %v452 = vld [vmem:[#allocation7 + $0x30] sm:$0xff]
        %v453 = vld [vmem:[#allocation7 + $0x38] sm:$0xff]
        %v454 = vld [vmem:[#allocation7 + $0x40] sm:$0xff]
        %v455 = vld [vmem:[#allocation7 + $0x48] sm:$0xff]
        %v456 = vld [vmem:[#allocation7 + $0x50] sm:$0xff]
        %v457 = vld [vmem:[#allocation7 + $0x58] sm:$0xff]
        %v458 = vld [vmem:[#allocation7 + $0x60] sm:$0xff]
        %v459 = vld [vmem:[#allocation7 + $0x68] sm:$0xff]
        %v460 = vld [vmem:[#allocation7 + $0x70] sm:$0xff]
        %v461 = vld [vmem:[#allocation7 + $0x78] sm:$0xff]
        %v462 = vld [vmem:[#allocation7 + $0x80] sm:$0xff]
        %v463 = vld [vmem:[#allocation7 + $0x88] sm:$0xff]
        %v464 = vld [vmem:[#allocation7 + $0x90] sm:$0xff]
        %v465 = vld [vmem:[#allocation7 + $0x98] sm:$0xff]
        %v466 = vld [vmem:[#allocation7 + $0xa0] sm:$0xff]
        %v467 = vld [vmem:[#allocation7 + $0xa8] sm:$0xff]
        %v468 = vld [vmem:[#allocation7 + $0xb0] sm:$0xff]
        %v469 = vld [vmem:[#allocation7 + $0xb8] sm:$0xff]
        %v470 = vld [vmem:[#allocation7 + $0xc0] sm:$0xff]
        %v471 = vld [vmem:[#allocation7 + $0xc8] sm:$0xff]
        %v472 = vld [vmem:[#allocation7 + $0xd0] sm:$0xff]
        %v473 = vld [vmem:[#allocation7 + $0xd8] sm:$0xff]
        %v474 = vld [vmem:[#allocation7 + $0xe0] sm:$0xff]
        %v475 = vld [vmem:[#allocation7 + $0xe8] sm:$0xff]
        %v476 = vld [vmem:[#allocation7 + $0xf0] sm:$0xff]
        %v477 = vld [vmem:[#allocation7 + $0xf8] sm:$0xff]
        %v478 = vld [vmem:[#allocation7 + $0x100] sm:$0xff]
        %v479 = vld [vmem:[#allocation7 + $0x108] sm:$0xff]
        %v480 = vld [vmem:[#allocation7 + $0x110] sm:$0xff]
        %v481 = vld [vmem:[#allocation7 + $0x118] sm:$0xff]
        %v482 = vld [vmem:[#allocation7 + $0x120] sm:$0xff]
        %v483 = vld [vmem:[#allocation7 + $0x128] sm:$0xff]
        %v484 = vld [vmem:[#allocation7 + $0x130] sm:$0xff]
        %v485 = vld [vmem:[#allocation7 + $0x138] sm:$0xff]
        %v486 = vld [vmem:[#allocation7 + $0x140] sm:$0xff]
        %v487 = vld [vmem:[#allocation7 + $0x148] sm:$0xff]
        %v488 = vld [vmem:[#allocation7 + $0x150] sm:$0xff]
        %v489 = vld [vmem:[#allocation7 + $0x158] sm:$0xff]
        %v490 = vld [vmem:[#allocation7 + $0x160] sm:$0xff]
        %v491 = vld [vmem:[#allocation7 + $0x168] sm:$0xff]
        %v492 = vld [vmem:[#allocation7 + $0x170] sm:$0xff]
        %v493 = vld [vmem:[#allocation7 + $0x178] sm:$0xff]
        %v494 = vld [vmem:[#allocation7 + $0x180] sm:$0xff]
        %v495 = vld [vmem:[#allocation7 + $0x188] sm:$0xff]
        %v496 = vld [vmem:[#allocation7 + $0x190] sm:$0xff]
        %v497 = vld [vmem:[#allocation7 + $0x198] sm:$0xff]
        %v498 = vld [vmem:[#allocation7 + $0x1a0] sm:$0xff]
        %v499 = vld [vmem:[#allocation7 + $0x1a8] sm:$0xff]
        %v500 = vld [vmem:[#allocation7 + $0x1b0] sm:$0xff]
        %v501 = vld [vmem:[#allocation7 + $0x1b8] sm:$0xff]
        %v502 = vld [vmem:[#allocation7 + $0x1c0] sm:$0xff]
        %v503 = vld [vmem:[#allocation7 + $0x1c8] sm:$0xff]
        %v504 = vld [vmem:[#allocation7 + $0x1d0] sm:$0xff]
        %v505 = vld [vmem:[#allocation7 + $0x1d8] sm:$0xff]
        %v506 = vld [vmem:[#allocation7 + $0x1e0] sm:$0xff]
        %v507 = vld [vmem:[#allocation7 + $0x1e8] sm:$0xff]
        %v508 = vld [vmem:[#allocation7 + $0x1f0] sm:$0xff]
        %v509 = vld [vmem:[#allocation7 + $0x1f8] sm:$0xff]
        %v510 = vld [vmem:[%s4] sm:$0x3]
        %v512 = vlaneseq
        %v513 = vshrl.u32 %v512, 7
        %v514 = vsub.s32 0, %v513
        %v515 = vrot.slane %v510, %v514
        %v516 = vlaneseq
        %v517 = vshrl.u32 %v516, 7
        %v518 = vsub.s32 1, %v517
        %v519 = vrot.slane %v510, %v518
        %522 = vmatprep.subr.mxu0 %v447
        %523 = vmatpush1.msra.mxu0 %v446
        %524 = vmatprep.subr.mxu0 %v449
        %525 = vmatpush1.msra.mxu0 %v448
        %526 = vmatprep.subr.mxu0 %v451
        %527 = vmatpush1.msra.mxu0 %v450
        %528 = vmatprep.subr.mxu0 %v453
        %529 = vmatpush1.msra.mxu0 %v452
        %530 = vmatprep.subr.mxu0 %v455
        %531 = vmatpush1.msra.mxu0 %v454
        %532 = vmatprep.subr.mxu0 %v457
        %533 = vmatpush1.msra.mxu0 %v456
        %534 = vmatprep.subr.mxu0 %v459
        %535 = vmatpush1.msra.mxu0 %v458
        %536 = vmatprep.subr.mxu0 %v461
        %537 = vmatpush1.msra.mxu0 %v460
        %538 = vmatprep.subr.mxu0 %v463
        %539 = vmatpush1.msra.mxu0 %v462
        %540 = vmatprep.subr.mxu0 %v465
        %541 = vmatpush1.msra.mxu0 %v464
        %542 = vmatprep.subr.mxu0 %v467
        %543 = vmatpush1.msra.mxu0 %v466
        %544 = vmatprep.subr.mxu0 %v469
        %545 = vmatpush1.msra.mxu0 %v468
        %546 = vmatprep.subr.mxu0 %v471
        %547 = vmatpush1.msra.mxu0 %v470
        %548 = vmatprep.subr.mxu0 %v473
        %549 = vmatpush1.msra.mxu0 %v472
        %550 = vmatprep.subr.mxu0 %v475
        %551 = vmatpush1.msra.mxu0 %v474
        %552 = vmatprep.subr.mxu0 %v477
        %553 = vmatpush1.msra.mxu0 %v476
        %554 = vmatprep.subr.mxu0 %v479
        %555 = vmatpush1.msra.mxu0 %v478
        %556 = vmatprep.subr.mxu0 %v481
        %557 = vmatpush1.msra.mxu0 %v480
        %558 = vmatprep.subr.mxu0 %v483
        %559 = vmatpush1.msra.mxu0 %v482
        %560 = vmatprep.subr.mxu0 %v485
        %561 = vmatpush1.msra.mxu0 %v484
        %562 = vmatprep.subr.mxu0 %v487
        %563 = vmatpush1.msra.mxu0 %v486
        %564 = vmatprep.subr.mxu0 %v489
        %565 = vmatpush1.msra.mxu0 %v488
        %566 = vmatprep.subr.mxu0 %v491
        %567 = vmatpush1.msra.mxu0 %v490
        %568 = vmatprep.subr.mxu0 %v493
        %569 = vmatpush1.msra.mxu0 %v492
        %570 = vmatprep.subr.mxu0 %v495
        %571 = vmatpush1.msra.mxu0 %v494
        %572 = vmatprep.subr.mxu0 %v497
        %573 = vmatpush1.msra.mxu0 %v496
        %574 = vmatprep.subr.mxu0 %v499
        %575 = vmatpush1.msra.mxu0 %v498
        %576 = vmatprep.subr.mxu0 %v501
        %577 = vmatpush1.msra.mxu0 %v500
        %578 = vmatprep.subr.mxu0 %v503
        %579 = vmatpush1.msra.mxu0 %v502
        %580 = vmatprep.subr.mxu0 %v505
        %581 = vmatpush1.msra.mxu0 %v504
        %582 = vmatprep.subr.mxu0 %v507
        %583 = vmatpush1.msra.mxu0 %v506
        %584 = vmatprep.subr.mxu0 %v509
        %585 = vmatpush1.msra.mxu0 %v508
        %586 = vmatprep.mubr.f32.mxu0 %v445
        %587 = vmatmul.mubr.f32.gmra.mrb[0].mxu0 %v444
        %v588 = vpop.f32.mrb[0].mxu0
        %v589 = vadd.f32 %v515, %v588
        %v590 = vpop.f32.mrb[0].mxu0
        %v591 = vadd.f32 %v519, %v590
        %592 = vdwg.mxu0
        %vm593 = vcmp.gt.f32.partialorder %v589, 0.0
        %vm594 = vcmp.gt.f32.partialorder %v591, 0.0
        %v595 = vmin.f32 %v589, 0.0
        %v596 = vmin.f32 %v591, 0.0
        %v597 = vmul.f32 %v595, 1.442695
        %v598 = vpow.pop %v597
        %v599 = vmul.f32 %v596, 1.442695
        %v600 = vpow.pop %v599
        %v601 = vsub.f32 %v598, 1.0
        %v602 = vsub.f32 %v600, 1.0
        %v603 = vsel %vm593, %v589, %v601
        %v604 = vsel %vm594, %v591, %v602
        %v605 = vld [vmem:[#allocation8] sm:$0xff]
        %v606 = vld [vmem:[#allocation8 + $0x8] sm:$0xff]
        %v607 = vld [vmem:[#allocation8 + $0x10] sm:$0xff]
        %v608 = vld [vmem:[#allocation8 + $0x18] sm:$0xff]
        %v609 = vld [vmem:[#allocation8 + $0x20] sm:$0xff]
        %v610 = vld [vmem:[#allocation8 + $0x28] sm:$0xff]
        %v611 = vld [vmem:[#allocation8 + $0x30] sm:$0xff]
        %v612 = vld [vmem:[#allocation8 + $0x38] sm:$0xff]
        %v613 = vld [vmem:[#allocation8 + $0x40] sm:$0xff]
        %v614 = vld [vmem:[#allocation8 + $0x48] sm:$0xff]
        %v615 = vld [vmem:[#allocation8 + $0x50] sm:$0xff]
        %v616 = vld [vmem:[#allocation8 + $0x58] sm:$0xff]
        %v617 = vld [vmem:[#allocation8 + $0x60] sm:$0xff]
        %v618 = vld [vmem:[#allocation8 + $0x68] sm:$0xff]
        %v619 = vld [vmem:[#allocation8 + $0x70] sm:$0xff]
        %v620 = vld [vmem:[#allocation8 + $0x78] sm:$0xff]
        %v621 = vld [vmem:[#allocation8 + $0x80] sm:$0xff]
        %v622 = vld [vmem:[#allocation8 + $0x88] sm:$0xff]
        %v623 = vld [vmem:[#allocation8 + $0x90] sm:$0xff]
        %v624 = vld [vmem:[#allocation8 + $0x98] sm:$0xff]
        %v625 = vld [vmem:[#allocation8 + $0xa0] sm:$0xff]
        %v626 = vld [vmem:[#allocation8 + $0xa8] sm:$0xff]
        %v627 = vld [vmem:[#allocation8 + $0xb0] sm:$0xff]
        %v628 = vld [vmem:[#allocation8 + $0xb8] sm:$0xff]
        %v629 = vld [vmem:[#allocation8 + $0xc0] sm:$0xff]
        %v630 = vld [vmem:[#allocation8 + $0xc8] sm:$0xff]
        %v631 = vld [vmem:[#allocation8 + $0xd0] sm:$0xff]
        %v632 = vld [vmem:[#allocation8 + $0xd8] sm:$0xff]
        %v633 = vld [vmem:[#allocation8 + $0xe0] sm:$0xff]
        %v634 = vld [vmem:[#allocation8 + $0xe8] sm:$0xff]
        %v635 = vld [vmem:[#allocation8 + $0xf0] sm:$0xff]
        %v636 = vld [vmem:[#allocation8 + $0xf8] sm:$0xff]
        %v637 = vld [vmem:[#allocation8 + $0x100] sm:$0xff]
        %v638 = vld [vmem:[#allocation8 + $0x108] sm:$0xff]
        %v639 = vld [vmem:[#allocation8 + $0x110] sm:$0xff]
        %v640 = vld [vmem:[#allocation8 + $0x118] sm:$0xff]
        %v641 = vld [vmem:[#allocation8 + $0x120] sm:$0xff]
        %v642 = vld [vmem:[#allocation8 + $0x128] sm:$0xff]
        %v643 = vld [vmem:[#allocation8 + $0x130] sm:$0xff]
        %v644 = vld [vmem:[#allocation8 + $0x138] sm:$0xff]
        %v645 = vld [vmem:[#allocation8 + $0x140] sm:$0xff]
        %v646 = vld [vmem:[#allocation8 + $0x148] sm:$0xff]
        %v647 = vld [vmem:[#allocation8 + $0x150] sm:$0xff]
        %v648 = vld [vmem:[#allocation8 + $0x158] sm:$0xff]
        %v649 = vld [vmem:[#allocation8 + $0x160] sm:$0xff]
        %v650 = vld [vmem:[#allocation8 + $0x168] sm:$0xff]
        %v651 = vld [vmem:[#allocation8 + $0x170] sm:$0xff]
        %v652 = vld [vmem:[#allocation8 + $0x178] sm:$0xff]
        %v653 = vld [vmem:[#allocation8 + $0x180] sm:$0xff]
        %v654 = vld [vmem:[#allocation8 + $0x188] sm:$0xff]
        %v655 = vld [vmem:[#allocation8 + $0x190] sm:$0xff]
        %v656 = vld [vmem:[#allocation8 + $0x198] sm:$0xff]
        %v657 = vld [vmem:[#allocation8 + $0x1a0] sm:$0xff]
        %v658 = vld [vmem:[#allocation8 + $0x1a8] sm:$0xff]
        %v659 = vld [vmem:[#allocation8 + $0x1b0] sm:$0xff]
        %v660 = vld [vmem:[#allocation8 + $0x1b8] sm:$0xff]
        %v661 = vld [vmem:[#allocation8 + $0x1c0] sm:$0xff]
        %v662 = vld [vmem:[#allocation8 + $0x1c8] sm:$0xff]
        %v663 = vld [vmem:[#allocation8 + $0x1d0] sm:$0xff]
        %v664 = vld [vmem:[#allocation8 + $0x1d8] sm:$0xff]
        %v665 = vld [vmem:[#allocation8 + $0x1e0] sm:$0xff]
        %v666 = vld [vmem:[#allocation8 + $0x1e8] sm:$0xff]
        %v667 = vld [vmem:[#allocation8 + $0x1f0] sm:$0xff]
        %v668 = vld [vmem:[#allocation8 + $0x1f8] sm:$0xff]
        %v669 = vld [vmem:[%s6] sm:$0x3]
        %v671 = vlaneseq
        %v672 = vshrl.u32 %v671, 7
        %v673 = vsub.s32 0, %v672
        %v674 = vrot.slane %v669, %v673
        %v675 = vlaneseq
        %v676 = vshrl.u32 %v675, 7
        %v677 = vsub.s32 1, %v676
        %v678 = vrot.slane %v669, %v677
        %681 = vmatprep.subr.mxu0 %v606
        %682 = vmatpush1.msra.mxu0 %v605
        %683 = vmatprep.subr.mxu0 %v608
        %684 = vmatpush1.msra.mxu0 %v607
        %685 = vmatprep.subr.mxu0 %v610
        %686 = vmatpush1.msra.mxu0 %v609
        %687 = vmatprep.subr.mxu0 %v612
        %688 = vmatpush1.msra.mxu0 %v611
        %689 = vmatprep.subr.mxu0 %v614
        %690 = vmatpush1.msra.mxu0 %v613
        %691 = vmatprep.subr.mxu0 %v616
        %692 = vmatpush1.msra.mxu0 %v615
        %693 = vmatprep.subr.mxu0 %v618
        %694 = vmatpush1.msra.mxu0 %v617
        %695 = vmatprep.subr.mxu0 %v620
        %696 = vmatpush1.msra.mxu0 %v619
        %697 = vmatprep.subr.mxu0 %v622
        %698 = vmatpush1.msra.mxu0 %v621
        %699 = vmatprep.subr.mxu0 %v624
        %700 = vmatpush1.msra.mxu0 %v623
        %701 = vmatprep.subr.mxu0 %v626
        %702 = vmatpush1.msra.mxu0 %v625
        %703 = vmatprep.subr.mxu0 %v628
        %704 = vmatpush1.msra.mxu0 %v627
        %705 = vmatprep.subr.mxu0 %v630
        %706 = vmatpush1.msra.mxu0 %v629
        %707 = vmatprep.subr.mxu0 %v632
        %708 = vmatpush1.msra.mxu0 %v631
        %709 = vmatprep.subr.mxu0 %v634
        %710 = vmatpush1.msra.mxu0 %v633
        %711 = vmatprep.subr.mxu0 %v636
        %712 = vmatpush1.msra.mxu0 %v635
        %713 = vmatprep.subr.mxu0 %v638
        %714 = vmatpush1.msra.mxu0 %v637
        %715 = vmatprep.subr.mxu0 %v640
        %716 = vmatpush1.msra.mxu0 %v639
        %717 = vmatprep.subr.mxu0 %v642
        %718 = vmatpush1.msra.mxu0 %v641
        %719 = vmatprep.subr.mxu0 %v644
        %720 = vmatpush1.msra.mxu0 %v643
        %721 = vmatprep.subr.mxu0 %v646
        %722 = vmatpush1.msra.mxu0 %v645
        %723 = vmatprep.subr.mxu0 %v648
        %724 = vmatpush1.msra.mxu0 %v647
        %725 = vmatprep.subr.mxu0 %v650
        %726 = vmatpush1.msra.mxu0 %v649
        %727 = vmatprep.subr.mxu0 %v652
        %728 = vmatpush1.msra.mxu0 %v651
        %729 = vmatprep.subr.mxu0 %v654
        %730 = vmatpush1.msra.mxu0 %v653
        %731 = vmatprep.subr.mxu0 %v656
        %732 = vmatpush1.msra.mxu0 %v655
        %733 = vmatprep.subr.mxu0 %v658
        %734 = vmatpush1.msra.mxu0 %v657
        %735 = vmatprep.subr.mxu0 %v660
        %736 = vmatpush1.msra.mxu0 %v659
        %737 = vmatprep.subr.mxu0 %v662
        %738 = vmatpush1.msra.mxu0 %v661
        %739 = vmatprep.subr.mxu0 %v664
        %740 = vmatpush1.msra.mxu0 %v663
        %741 = vmatprep.subr.mxu0 %v666
        %742 = vmatpush1.msra.mxu0 %v665
        %743 = vmatprep.subr.mxu0 %v668
        %744 = vmatpush1.msra.mxu0 %v667
        %745 = vmatprep.mubr.f32.mxu0 %v604
        %746 = vmatmul.mubr.f32.gmra.mrb[0].mxu0 %v603
        %v747 = vpop.f32.mrb[0].mxu0
        %v748 = vadd.f32 %v674, %v747
        %v749 = vpop.f32.mrb[0].mxu0
        %v750 = vadd.f32 %v678, %v749
        %751 = vdwg.mxu0
        %vm752 = vcmp.gt.f32.partialorder %v748, 0.0
        %vm753 = vcmp.gt.f32.partialorder %v750, 0.0
        %v754 = vmin.f32 %v748, 0.0
        %v755 = vmin.f32 %v750, 0.0
        %v756 = vmul.f32 %v754, 1.442695
        %v757 = vpow.pop %v756
        %v758 = vmul.f32 %v755, 1.442695
        %v759 = vpow.pop %v758
        %v760 = vsub.f32 %v757, 1.0
        %v761 = vsub.f32 %v759, 1.0
        %v762 = vsel %vm752, %v748, %v760
        %v763 = vsel %vm753, %v750, %v761
        %764 = vst [vmem:[%s337] sm:$0xff] %v762
        %vm765 = vcmask 588800
        %766 = vst.msk [vmem:[%s337 + $0x8] sm:$0xff] %vm765, %v763
        %s767 = sand.u32 %s186, 1
        %s768 = scalar_lea.sflag [#allocation4], %s767
        %s769 = sand.u32 %s186, 1
        %s770 = smul.addr %s769, 16
        %s771 = scalar_lea.vmem [#allocation10], %s770
        // Predicated region
        $region65: #{tpu_custom_call.1} parent=47 // pred_check
          %p772 = pneg %p196
        $region66: #{tpu_custom_call.1} parent=47 // pred_check_branch
          %774 = sbr.rel (%p772) target = $region68
        $region67: #{tpu_custom_call.1} parent=47 // pred_region
          %s776 = ssub.s32 256, 256
          %777 = vsyncadd %s768, %s776
          %s778 = smul.addr %s26, 2
          %s779 = smul.addr %s778, 128
          %s780 = scalar_lea.hbm %s7, %s779
          %s782 = sshll.u32 %s771, 4
          %s783 = int_to_ptr.vmem [resolvable:$true] %s782
          %785 = dma.vmem_to_hbm [thread:$0]  %s783, 256, %s780, %s768
        $region68: #{tpu_custom_call.1} parent=47 // pred_fallthru
          _
      $region48: #{tpu_custom_call.1} parent=5 // pred_fallthru
        _
      %p786 = scmp.le.s32.totalorder 2, %s21
      // Predicated region
      $region69: #{tpu_custom_call.1} parent=5 // pred_check
        %p787 = pneg %p786
      $region70: #{tpu_custom_call.1} parent=5 // pred_check_branch
        %789 = sbr.rel (%p787) target = $region72
      $region71: #{tpu_custom_call.1} parent=5 // pred_region
        %s790 = ssub.s32 %s21, 2
        // Predicated region
        $region73: #{tpu_custom_call.1} parent=71 // pred_check
          %p791 = pneg %p202
        $region74: #{tpu_custom_call.1} parent=71 // pred_check_branch
          %793 = sbr.rel (%p791) target = $region76
        $region75: #{tpu_custom_call.1} parent=71 // pred_region
          %s794 = sand.u32 %s187, 1
          %s795 = scalar_lea.sflag [#allocation4], %s794
          %s796 = sand.u32 %s187, 1
          %s797 = smul.addr %s796, 16
          %s798 = scalar_lea.vmem [#allocation10], %s797
          %799 = dma.done %s795, 256
        $region76: #{tpu_custom_call.1} parent=71 // pred_fallthru
          _
      $region72: #{tpu_custom_call.1} parent=5 // pred_fallthru
        _
    $region6: #{tpu_custom_call.1} parent=1 // loop_footer
      %s25 = sadd.s32 1, %s21
    $region7: #{tpu_custom_call.1} parent=1 // loop_footer_branch
      %20 = sbr.rel target = $region3
    $region8: #{tpu_custom_call.1} parent=1 // loop_exit
      _
    %800 = vsyncpa [#allocation3], 1
    %s801 = scalar_lea.sflag [#allocation3], 1
    %802 = vsyncpa %s801, 1
    %803 = vsyncpa [#allocation6], 1
    %804 = vsyncpa [#allocation9], 1
    %805 = vsyncpa [#allocation4], 1
    %s806 = scalar_lea.sflag [#allocation4], 1
    %807 = vsyncpa %s806, 1

</llo_original>
